<compile_context>
chip_gen: v6e
topology: v6e:2x2x1
jax: 0.10.0
libtpu: 0.0.40
codegen_flags: <defaults>
</compile_context>

<pallas_src>
import jax
import jax.numpy as jnp
from jax.experimental import pallas as pl
from jax.experimental.pallas import tpu as pltpu


def _round_up(x, m):
    return ((x + m - 1) // m) * m


def _three_class_kernel(x_ref, w1_ref, b1_ref, w2_ref, b2_ref, out_ref):
    x = x_ref[...]                                                   # (TB, In)

    # Fused first layer: both heads in one matmul, 128-lane hidden.
    h = jnp.dot(x, w1_ref[...], preferred_element_type=jnp.float32)  # (TB, Hpad)
    h = jnp.maximum(h + b1_ref[...], 0.0)                            # ReLU

    # Fused block-diagonal second layer -> logits for both heads at once.
    z = jnp.dot(h, w2_ref[...], preferred_element_type=jnp.float32)  # (TB, 2)
    z = z + b2_ref[...]

    # One sigmoid pass over both columns (EUP).
    p = 1.0 / (1.0 + jnp.exp(-z))                                    # (TB, 2)
    p0 = p[:, 0:1]
    p2 = p[:, 1:2]

    # Assemble [p0, 1 - p0 - p2, p2] without a lane-shuffling concatenate:
    # single select over a broadcasted column index, one full-block store.
    col = jax.lax.broadcasted_iota(jnp.int32, out_ref.shape, 1)      # (TB, 3)
    out = jnp.where(col == 0, p0, jnp.where(col == 2, p2, 1.0 - p0 - p2))
    out_ref[...] = out.astype(out_ref.dtype)


def three_class_classifier(x, params, *, tile_batch=512):
    """x: (batch, input_size) float32. params: dict of the 8 weight/bias arrays."""
    batch, in_size = x.shape
    hidden = params["w1_01"].shape[1]
    two_h = 2 * hidden
    h_pad = max(128, _round_up(two_h, 128))   # full 128-lane hidden vregs

    # --- one-time weight repack (fused + zero-padded) --------------------
    w1 = jnp.concatenate([params["w1_01"], params["w1_12"]], axis=1)   # (In, 2H)
    b1 = jnp.concatenate([params["b1_01"], params["b1_12"]], axis=1)   # (1, 2H)
    if h_pad != two_h:
        w1 = jnp.pad(w1, ((0, 0), (0, h_pad - two_h)))
        b1 = jnp.pad(b1, ((0, 0), (0, h_pad - two_h)))
    w2 = jnp.zeros((h_pad, 2), jnp.float32)
    w2 = w2.at[:hidden, 0:1].set(params["w2_01"])
    w2 = w2.at[hidden:two_h, 1:2].set(params["w2_12"])
    b2 = jnp.concatenate([params["b2_01"], params["b2_12"]], axis=1)   # (1, 2)

    # --- batch tiling -----------------------------------------------------
    tb = max(8, min(_round_up(batch, 8), (tile_batch // 8) * 8))
    batch_pad = _round_up(batch, tb)
    if batch_pad != batch:
        x = jnp.pad(x, ((0, batch_pad - batch), (0, 0)))
    grid = (batch_pad // tb,)

    # Rough VMEM estimate (double-buffered x/out tiles + resident weights + h).
    est = 4 * (2 * tb * in_size + 2 * tb * 3
               + in_size * h_pad + h_pad + h_pad * 2 + 2
               + tb * h_pad)
    vmem_limit = None
    if est > 24 * 1024 * 1024:
        # Raise above the 16/32 MiB scoped defaults; cap at 64 MiB to stay
        # safe on v7x's 64 MiB physical VMEM.
        vmem_limit = min(64 * 1024 * 1024, int(est * 2))

    out = pl.pallas_call(
        _three_class_kernel,
        out_shape=jax.ShapeDtypeStruct((batch_pad, 3), jnp.float32),
        grid=grid,
        in_specs=[
            pl.BlockSpec((tb, in_size), lambda i: (i, 0)),   # x: tiled over batch
            pl.BlockSpec((in_size, h_pad), lambda i: (0, 0)),  # fused W1 (resident)
            pl.BlockSpec((1, h_pad), lambda i: (0, 0)),        # fused b1
            pl.BlockSpec((h_pad, 2), lambda i: (0, 0)),        # block-diag W2
            pl.BlockSpec((1, 2), lambda i: (0, 0)),            # fused b2
        ],
        out_specs=pl.BlockSpec((tb, 3), lambda i: (i, 0)),
        compiler_params=pltpu.CompilerParams(
            dimension_semantics=("parallel",),
            vmem_limit_bytes=vmem_limit,
        ),
    )(x, w1, b1, w2, b2)
    return out[:batch]


def init_params(key, input_size, hidden_size):
    ks = jax.random.split(key, 8)
    s1 = 1.0 / jnp.sqrt(jnp.float32(input_size))
    s2 = 1.0 / jnp.sqrt(jnp.float32(hidden_size))
    return {
        # binary_01
        "w1_01": jax.random.uniform(ks[0], (input_size, hidden_size), jnp.float32, -s1, s1),
        "b1_01": jax.random.uniform(ks[1], (1, hidden_size), jnp.float32, -s1, s1),
        "w2_01": jax.random.uniform(ks[2], (hidden_size, 1), jnp.float32, -s2, s2),
        "b2_01": jax.random.uniform(ks[3], (1, 1), jnp.float32, -s2, s2),
        # binary_12
        "w1_12": jax.random.uniform(ks[4], (input_size, hidden_size), jnp.float32, -s1, s1),
        "b1_12": jax.random.uniform(ks[5], (1, hidden_size), jnp.float32, -s1, s1),
        "w2_12": jax.random.uniform(ks[6], (hidden_size, 1), jnp.float32, -s2, s2),
        "b2_12": jax.random.uniform(ks[7], (1, 1), jnp.float32, -s2, s2),
    }


def _reference(x, p):
    def head(x, w1, b1, w2, b2):
        h = jnp.maximum(x @ w1 + b1, 0.0)
        z = h @ w2 + b2
        return 1.0 / (1.0 + jnp.exp(-z))
    p0 = head(x, p["w1_01"], p["b1_01"], p["w2_01"], p["b2_01"])
    p2 = head(x, p["w1_12"], p["b1_12"], p["w2_12"], p["b2_12"])
    return jnp.concatenate([p0, 1.0 - p0 - p2, p2], axis=1)


if __name__ == "__main__":
    key = jax.random.PRNGKey(0)
    k_x, k_p = jax.random.split(key)

    batch, input_size, hidden_size = 8, 32, 32
    x = jax.random.normal(k_x, (batch, input_size), jnp.float32)
    params = init_params(k_p, input_size, hidden_size)

    out = three_class_classifier(x, params)
    jax.block_until_ready(out)

    ref = _reference(x, params)
    assert out.shape == (batch, 3)
    assert jnp.allclose(out, ref, atol=1e-5, rtol=1e-5)

    print("KERNEL_OK")
</pallas_src>

<mosaic_0001>
module attributes {stable_mosaic.version = 11 : i64} {
  func.func @_three_class_kernel(%arg0: i32, %arg1: memref<8x32xf32, #tpu.memory_space<vmem>>, %arg2: memref<32x128xf32, #tpu.memory_space<vmem>>, %arg3: memref<1x128xf32, #tpu.memory_space<vmem>>, %arg4: memref<128x2xf32, #tpu.memory_space<vmem>>, %arg5: memref<1x2xf32, #tpu.memory_space<vmem>>, %arg6: memref<8x3xf32, #tpu.memory_space<vmem>>) attributes {dimension_semantics = [#tpu.dimension_semantics<parallel>], iteration_bounds = array<i64: 1>, scalar_prefetch = 0 : i64, scratch_operands = 0 : i64, tpu.core_type = #tpu.core_type<tc>, window_params = [{transform_indices = @transform_0, window_bounds = array<i64: 8, 32>}, {pipeline_mode = #tpu.pipeline_mode<synchronous>, transform_indices = @transform_1, window_bounds = array<i64: 32, 128>}, {pipeline_mode = #tpu.pipeline_mode<synchronous>, transform_indices = @transform_2, window_bounds = array<i64: 1, 128>}, {pipeline_mode = #tpu.pipeline_mode<synchronous>, transform_indices = @transform_3, window_bounds = array<i64: 128, 2>}, {pipeline_mode = #tpu.pipeline_mode<synchronous>, transform_indices = @transform_4, window_bounds = array<i64: 1, 2>}, {transform_indices = @transform_5, window_bounds = array<i64: 8, 3>}]} {
    %c0 = arith.constant 0 : index
    %c0_0 = arith.constant 0 : index
    %0 = vector.load %arg1[%c0, %c0_0] : memref<8x32xf32, #tpu.memory_space<vmem>>, vector<8x32xf32>
    %c0_1 = arith.constant 0 : index
    %c0_2 = arith.constant 0 : index
    %1 = vector.load %arg2[%c0_1, %c0_2] : memref<32x128xf32, #tpu.memory_space<vmem>>, vector<32x128xf32>
    %cst = arith.constant dense<0.000000e+00> : vector<8x128xf32>
    %2 = tpu.matmul %0, %1, %cst {dimension_numbers = #tpu.dot_dimension_numbers<[1], [0], [0], [1], [0, 0, 1, 1], [], []>} : vector<8x32xf32>, vector<32x128xf32>, vector<8x128xf32> -> vector<8x128xf32>
    %c0_3 = arith.constant 0 : index
    %c0_4 = arith.constant 0 : index
    %3 = vector.load %arg3[%c0_3, %c0_4] : memref<1x128xf32, #tpu.memory_space<vmem>>, vector<1x128xf32>
    %4 = vector.broadcast %3 : vector<1x128xf32> to vector<8x128xf32>
    %5 = arith.addf %2, %4 : vector<8x128xf32>
    %cst_5 = arith.constant 0.000000e+00 : f32
    %6 = vector.broadcast %cst_5 : f32 to vector<8x128xf32>
    %7 = arith.maximumf %5, %6 : vector<8x128xf32>
    %c0_6 = arith.constant 0 : index
    %c0_7 = arith.constant 0 : index
    %8 = vector.load %arg4[%c0_6, %c0_7] : memref<128x2xf32, #tpu.memory_space<vmem>>, vector<128x2xf32>
    %cst_8 = arith.constant dense<0.000000e+00> : vector<8x2xf32>
    %9 = tpu.matmul %7, %8, %cst_8 {dimension_numbers = #tpu.dot_dimension_numbers<[1], [0], [0], [1], [0, 0, 1, 1], [], []>} : vector<8x128xf32>, vector<128x2xf32>, vector<8x2xf32> -> vector<8x2xf32>
    %c0_9 = arith.constant 0 : index
    %c0_10 = arith.constant 0 : index
    %10 = vector.load %arg5[%c0_9, %c0_10] : memref<1x2xf32, #tpu.memory_space<vmem>>, vector<1x2xf32>
    %11 = vector.broadcast %10 : vector<1x2xf32> to vector<8x2xf32>
    %12 = arith.addf %9, %11 : vector<8x2xf32>
    %cst_11 = arith.constant 0.000000e+00 : f32
    %13 = vector.broadcast %cst_11 : f32 to vector<8x2xf32>
    %14 = arith.subf %13, %12 : vector<8x2xf32>
    %15 = math.exp %14 : vector<8x2xf32>
    %cst_12 = arith.constant 1.000000e+00 : f32
    %16 = vector.broadcast %cst_12 : f32 to vector<8x2xf32>
    %17 = arith.addf %16, %15 : vector<8x2xf32>
    %cst_13 = arith.constant 1.000000e+00 : f32
    %18 = vector.broadcast %cst_13 : f32 to vector<8x2xf32>
    %19 = arith.divf %18, %17 : vector<8x2xf32>
    %20 = vector.extract_strided_slice %19 {offsets = [0, 0], sizes = [8, 1], strides = [1, 1]} : vector<8x2xf32> to vector<8x1xf32>
    %21 = vector.extract_strided_slice %19 {offsets = [0, 1], sizes = [8, 1], strides = [1, 1]} : vector<8x2xf32> to vector<8x1xf32>
    %22 = tpu.iota {dimensions = array<i32: 1>} : vector<8x3xi32>
    %c0_i32 = arith.constant 0 : i32
    %23 = vector.broadcast %c0_i32 : i32 to vector<8x3xi32>
    %24 = arith.cmpi eq, %22, %23 : vector<8x3xi32>
    %c2_i32 = arith.constant 2 : i32
    %25 = vector.broadcast %c2_i32 : i32 to vector<8x3xi32>
    %26 = arith.cmpi eq, %22, %25 : vector<8x3xi32>
    %cst_14 = arith.constant 1.000000e+00 : f32
    %27 = vector.broadcast %cst_14 : f32 to vector<8x1xf32>
    %28 = arith.subf %27, %20 : vector<8x1xf32>
    %29 = arith.subf %28, %21 : vector<8x1xf32>
    %30 = vector.shape_cast %21 : vector<8x1xf32> to vector<8x1xf32>
    %31 = vector.broadcast %30 : vector<8x1xf32> to vector<8x3xf32>
    %32 = vector.shape_cast %29 : vector<8x1xf32> to vector<8x1xf32>
    %33 = vector.broadcast %32 : vector<8x1xf32> to vector<8x3xf32>
    %34 = arith.select %26, %31, %33 : vector<8x3xi1>, vector<8x3xf32>
    %35 = vector.shape_cast %20 : vector<8x1xf32> to vector<8x1xf32>
    %36 = vector.broadcast %35 : vector<8x1xf32> to vector<8x3xf32>
    %37 = arith.select %24, %36, %34 : vector<8x3xi1>, vector<8x3xf32>
    %c0_15 = arith.constant 0 : index
    %c0_16 = arith.constant 0 : index
    %38 = vector.load %arg6[%c0_15, %c0_16] : memref<8x3xf32, #tpu.memory_space<vmem>>, vector<8x3xf32>
    tpu.vector_store %arg6[%c0_15, %c0_16], %37 {strides = array<i32>} : memref<8x3xf32, #tpu.memory_space<vmem>>, vector<8x3xf32>,
    return
  }
  func.func @transform_0(%arg0: i32) -> (i32, i32) {
    %c0_i32 = arith.constant 0 : i32
    %c0_i32_0 = arith.constant 0 : i32
    return %arg0, %c0_i32 : i32, i32
  }
  func.func @transform_1(%arg0: i32) -> (i32, i32) {
    %c0_i32 = arith.constant 0 : i32
    %c0_i32_0 = arith.constant 0 : i32
    %c0_i32_1 = arith.constant 0 : i32
    return %c0_i32, %c0_i32_0 : i32, i32
  }
  func.func @transform_2(%arg0: i32) -> (i32, i32) {
    %c0_i32 = arith.constant 0 : i32
    %c0_i32_0 = arith.constant 0 : i32
    %c0_i32_1 = arith.constant 0 : i32
    return %c0_i32, %c0_i32_0 : i32, i32
  }
  func.func @transform_3(%arg0: i32) -> (i32, i32) {
    %c0_i32 = arith.constant 0 : i32
    %c0_i32_0 = arith.constant 0 : i32
    %c0_i32_1 = arith.constant 0 : i32
    return %c0_i32, %c0_i32_0 : i32, i32
  }
  func.func @transform_4(%arg0: i32) -> (i32, i32) {
    %c0_i32 = arith.constant 0 : i32
    %c0_i32_0 = arith.constant 0 : i32
    %c0_i32_1 = arith.constant 0 : i32
    return %c0_i32, %c0_i32_0 : i32, i32
  }
  func.func @transform_5(%arg0: i32) -> (i32, i32) {
    %c0_i32 = arith.constant 0 : i32
    %c0_i32_0 = arith.constant 0 : i32
    return %arg0, %c0_i32 : i32, i32
  }
}

</mosaic_0001>

<llo_original>
// kernel: tpu_custom_call.1
$region0: #{tpu_custom_call.1}
  #allocation0 [shape = 'u32[]', space=smem, size = 0x4, offset = 0x4, fixed_abs, tag = 'smem constant byte address 0x4 - core index']
  #allocation1 [shape = 'u32[144,128]{1,0:T(1,128)}', space=vmem, size = 0x12000, scoped, tag = 'internal scratch']
  %s0 = inlined_call_operand.vmem [shape: f32[8,32], index: 0, kind: input, shape index: {}]
  %s1 = inlined_call_operand.vmem [shape: f32[32,128], index: 1, kind: input, shape index: {}]
  %s2 = inlined_call_operand.vmem [shape: f32[1,128], index: 2, kind: input, shape index: {}]
  %s3 = inlined_call_operand.vmem [shape: f32[128,2], index: 3, kind: input, shape index: {}]
  %s4 = inlined_call_operand.vmem [shape: f32[1,2], index: 4, kind: input, shape index: {}]
  %s5 = inlined_call_operand.vmem [shape: f32[8,3], index: 5, kind: output, shape index: {}]
  %s6 = sld [smem:[#allocation0]]
  $region30: #{tpu_custom_call.1} parent=0
    _
  %s8 = ssub.s32 1, %s6
  %s9 = scalar_select 0, %s8, %s6
  // Predicated region
  $region2: #{tpu_custom_call.1} parent=0 // pred_check
    _
  $region3: #{tpu_custom_call.1} parent=0 // pred_check_branch
    %11 = sbr.rel (0) target = $region5
  $region4: #{tpu_custom_call.1} parent=0 // pred_region
    _
  $region5: #{tpu_custom_call.1} parent=0 // pred_fallthru
    _
  // Predicated region
  $region6: #{tpu_custom_call.1} parent=0 // pred_check
    _
  $region7: #{tpu_custom_call.1} parent=0 // pred_check_branch
    %13 = sbr.rel (0) target = $region9
  $region8: #{tpu_custom_call.1} parent=0 // pred_region
    _
  $region9: #{tpu_custom_call.1} parent=0 // pred_fallthru
    _
  // Predicated region
  $region10: #{tpu_custom_call.1} parent=0 // pred_check
    _
  $region11: #{tpu_custom_call.1} parent=0 // pred_check_branch
    %15 = sbr.rel (0) target = $region13
  $region12: #{tpu_custom_call.1} parent=0 // pred_region
    _
  $region13: #{tpu_custom_call.1} parent=0 // pred_fallthru
    _
  // Predicated region
  $region14: #{tpu_custom_call.1} parent=0 // pred_check
    _
  $region15: #{tpu_custom_call.1} parent=0 // pred_check_branch
    %17 = sbr.rel (0) target = $region17
  $region16: #{tpu_custom_call.1} parent=0 // pred_region
    _
  $region17: #{tpu_custom_call.1} parent=0 // pred_fallthru
    _
  // Predicated region
  $region18: #{tpu_custom_call.1} parent=0 // pred_check
    _
  $region19: #{tpu_custom_call.1} parent=0 // pred_check_branch
    %19 = sbr.rel (0) target = $region21
  $region20: #{tpu_custom_call.1} parent=0 // pred_region
    _
  $region21: #{tpu_custom_call.1} parent=0 // pred_fallthru
    _
  %v20 = vld [vmem:[%s0] sm:$0xff]
  %v21 = vld [vmem:[%s1] sm:$0xff]
  %v22 = vld [vmem:[%s1 + $0x8] sm:$0xff]
  %v23 = vld [vmem:[%s1 + $0x10] sm:$0xff]
  %v24 = vld [vmem:[%s1 + $0x18] sm:$0xff]
  %v25 = vld [vmem:[%s2] sm:$0x1]
  %v27 = vlaneseq
  %v28 = vshrl.u32 %v27, 7
  %v29 = vsub.s32 0, %v28
  %v30 = vrot.slane %v25, %v29
  %vm32 = vcmask 261120
  %v34 = vsel %vm32, %v20, 0
  %36 = vmatprep.subr.mxu0 0.0
  %37 = vmatpush1.msra.mxu0 0.0
  %38 = vmatprep.subr.mxu0 0.0
  %39 = vmatpush1.msra.mxu0 0.0
  %40 = vmatprep.subr.mxu0 0.0
  %41 = vmatpush1.msra.mxu0 0.0
  %42 = vmatprep.subr.mxu0 0.0
  %43 = vmatpush1.msra.mxu0 0.0
  %44 = vmatprep.subr.mxu0 0.0
  %45 = vmatpush1.msra.mxu0 0.0
  %46 = vmatprep.subr.mxu0 0.0
  %47 = vmatpush1.msra.mxu0 0.0
  %48 = vmatprep.subr.mxu0 0.0
  %49 = vmatpush1.msra.mxu0 0.0
  %50 = vmatprep.subr.mxu0 0.0
  %51 = vmatpush1.msra.mxu0 0.0
  %52 = vmatprep.subr.mxu0 0.0
  %53 = vmatpush1.msra.mxu0 0.0
  %54 = vmatprep.subr.mxu0 0.0
  %55 = vmatpush1.msra.mxu0 0.0
  %56 = vmatprep.subr.mxu0 0.0
  %57 = vmatpush1.msra.mxu0 0.0
  %58 = vmatprep.subr.mxu0 0.0
  %59 = vmatpush1.msra.mxu0 0.0
  %60 = vmatprep.subr.mxu0 0.0
  %61 = vmatpush1.msra.mxu0 %v24
  %62 = vmatprep.subr.mxu0 0.0
  %63 = vmatpush1.msra.mxu0 %v23
  %64 = vmatprep.subr.mxu0 0.0
  %65 = vmatpush1.msra.mxu0 %v22
  %66 = vmatprep.subr.mxu0 0.0
  %67 = vmatpush1.msra.mxu0 %v21
  %68 = vmatprep.subr.mxu0 0.0
  %69 = vmatpush2.msra.mxu0 0.0
  %70 = vmatprep.subr.mxu0 0.0
  %71 = vmatpush2.msra.mxu0 0.0
  %72 = vmatprep.subr.mxu0 0.0
  %73 = vmatpush2.msra.mxu0 0.0
  %74 = vmatprep.subr.mxu0 0.0
  %75 = vmatpush2.msra.mxu0 0.0
  %76 = vmatprep.subr.mxu0 0.0
  %77 = vmatpush2.msra.mxu0 0.0
  %78 = vmatprep.subr.mxu0 0.0
  %79 = vmatpush2.msra.mxu0 0.0
  %80 = vmatprep.subr.mxu0 0.0
  %81 = vmatpush2.msra.mxu0 0.0
  %82 = vmatprep.subr.mxu0 0.0
  %83 = vmatpush2.msra.mxu0 0.0
  %84 = vmatprep.subr.mxu0 0.0
  %85 = vmatpush2.msra.mxu0 0.0
  %86 = vmatprep.subr.mxu0 0.0
  %87 = vmatpush2.msra.mxu0 0.0
  %88 = vmatprep.subr.mxu0 0.0
  %89 = vmatpush2.msra.mxu0 0.0
  %90 = vmatprep.subr.mxu0 0.0
  %91 = vmatpush2.msra.mxu0 0.0
  %92 = vmatprep.subr.mxu0 0.0
  %93 = vmatpush2.msra.mxu0 0.0
  %94 = vmatprep.subr.mxu0 0.0
  %95 = vmatpush2.msra.mxu0 0.0
  %96 = vmatprep.subr.mxu0 0.0
  %97 = vmatpush2.msra.mxu0 0.0
  %98 = vmatprep.subr.mxu0 0.0
  %99 = vmatpush2.msra.mxu0 0.0
  %100 = vmatprep.mubr.f32.mxu0 0.0
  %101 = vmatmul.mubr.f32.gmra.mxu0 %v34
  %v102 = vpop.f32.mrf.mxu0
  %v103 = vadd.f32 %v30, %v102
  %v104 = vpop.f32.mrf.mxu0
  %105 = vdwg.mxu0
  %v106 = vmax.f32 %v103, 0.0
  %v107 = vld [vmem:[%s3] sm:$0xff]
  %v108 = vld [vmem:[%s3 + $0x8] sm:$0xff]
  %v109 = vld [vmem:[%s3 + $0x10] sm:$0xff]
  %v110 = vld [vmem:[%s3 + $0x18] sm:$0xff]
  %v111 = vld [vmem:[%s3 + $0x20] sm:$0xff]
  %v112 = vld [vmem:[%s3 + $0x28] sm:$0xff]
  %v113 = vld [vmem:[%s3 + $0x30] sm:$0xff]
  %v114 = vld [vmem:[%s3 + $0x38] sm:$0xff]
  %v115 = vld [vmem:[%s3 + $0x40] sm:$0xff]
  %v116 = vld [vmem:[%s3 + $0x48] sm:$0xff]
  %v117 = vld [vmem:[%s3 + $0x50] sm:$0xff]
  %v118 = vld [vmem:[%s3 + $0x58] sm:$0xff]
  %v119 = vld [vmem:[%s3 + $0x60] sm:$0xff]
  %v120 = vld [vmem:[%s3 + $0x68] sm:$0xff]
  %v121 = vld [vmem:[%s3 + $0x70] sm:$0xff]
  %v122 = vld [vmem:[%s3 + $0x78] sm:$0xff]
  %v123 = vld [vmem:[%s4] sm:$0x1]
  %v125 = vlaneseq
  %v126 = vshrl.u32 %v125, 7
  %v127 = vsub.s32 0, %v126
  %v128 = vrot.slane %v123, %v127
  %130 = vmatprep.subr.mxu0 0.0
  %131 = vmatpush1.msra.mxu0 %v122
  %132 = vmatprep.subr.mxu0 0.0
  %133 = vmatpush1.msra.mxu0 %v121
  %134 = vmatprep.subr.mxu0 0.0
  %135 = vmatpush1.msra.mxu0 %v120
  %136 = vmatprep.subr.mxu0 0.0
  %137 = vmatpush1.msra.mxu0 %v119
  %138 = vmatprep.subr.mxu0 0.0
  %139 = vmatpush1.msra.mxu0 %v118
  %140 = vmatprep.subr.mxu0 0.0
  %141 = vmatpush1.msra.mxu0 %v117
  %142 = vmatprep.subr.mxu0 0.0
  %143 = vmatpush1.msra.mxu0 %v116
  %144 = vmatprep.subr.mxu0 0.0
  %145 = vmatpush1.msra.mxu0 %v115
  %146 = vmatprep.subr.mxu0 0.0
  %147 = vmatpush1.msra.mxu0 %v114
  %148 = vmatprep.subr.mxu0 0.0
  %149 = vmatpush1.msra.mxu0 %v113
  %150 = vmatprep.subr.mxu0 0.0
  %151 = vmatpush1.msra.mxu0 %v112
  %152 = vmatprep.subr.mxu0 0.0
  %153 = vmatpush1.msra.mxu0 %v111
  %154 = vmatprep.subr.mxu0 0.0
  %155 = vmatpush1.msra.mxu0 %v110
  %156 = vmatprep.subr.mxu0 0.0
  %157 = vmatpush1.msra.mxu0 %v109
  %158 = vmatprep.subr.mxu0 0.0
  %159 = vmatpush1.msra.mxu0 %v108
  %160 = vmatprep.subr.mxu0 0.0
  %161 = vmatpush1.msra.mxu0 %v107
  %162 = vmatprep.subr.mxu0 0.0
  %163 = vmatpush2.msra.mxu0 0.0
  %164 = vmatprep.subr.mxu0 0.0
  %165 = vmatpush2.msra.mxu0 0.0
  %166 = vmatprep.subr.mxu0 0.0
  %167 = vmatpush2.msra.mxu0 0.0
  %168 = vmatprep.subr.mxu0 0.0
  %169 = vmatpush2.msra.mxu0 0.0
  %170 = vmatprep.subr.mxu0 0.0
  %171 = vmatpush2.msra.mxu0 0.0
  %172 = vmatprep.subr.mxu0 0.0
  %173 = vmatpush2.msra.mxu0 0.0
  %174 = vmatprep.subr.mxu0 0.0
  %175 = vmatpush2.msra.mxu0 0.0
  %176 = vmatprep.subr.mxu0 0.0
  %177 = vmatpush2.msra.mxu0 0.0
  %178 = vmatprep.subr.mxu0 0.0
  %179 = vmatpush2.msra.mxu0 0.0
  %180 = vmatprep.subr.mxu0 0.0
  %181 = vmatpush2.msra.mxu0 0.0
  %182 = vmatprep.subr.mxu0 0.0
  %183 = vmatpush2.msra.mxu0 0.0
  %184 = vmatprep.subr.mxu0 0.0
  %185 = vmatpush2.msra.mxu0 0.0
  %186 = vmatprep.subr.mxu0 0.0
  %187 = vmatpush2.msra.mxu0 0.0
  %188 = vmatprep.subr.mxu0 0.0
  %189 = vmatpush2.msra.mxu0 0.0
  %190 = vmatprep.subr.mxu0 0.0
  %191 = vmatpush2.msra.mxu0 0.0
  %192 = vmatprep.subr.mxu0 0.0
  %193 = vmatpush2.msra.mxu0 0.0
  %194 = vmatprep.mubr.f32.mxu0 0.0
  %195 = vmatmul.mubr.f32.gmra.mxu0 %v106
  %v196 = vpop.f32.mrf.mxu0
  %v197 = vadd.f32 %v128, %v196
  %v198 = vpop.f32.mrf.mxu0
  %199 = vdwg.mxu0
  %v200 = vsub.f32 0.0, %v197
  %v201 = vmul.f32 %v200, 1.442695
  %v202 = vpow.pop %v201
  %v203 = vadd.f32 %v202, 1.0
  %v204 = vrcp.pop %v203
  %v205 = vmul.f32 1.0, %v204
  %v206 = vlaneseq
  %v207 = vand.u32 %v206, 127
  %vm208 = vcmp.eq.s32.totalorder %v207, 0
  %vm209 = vcmp.eq.s32.totalorder %v207, 2
  %v210 = vsub.f32 1.0, %v205
  %212 = vrot.lane.b32.xlu0 %v205, 127
  %v213 = vpop.permute.xlu0 %212
  %v215 = vsub.f32 %v210, %v213
  %216 = vset.pattern.permute.xlu0 1
  %217 = vperm.xlu0 %216, %v205
  %v218 = vpop.permute.xlu0 %217
  %221 = vset.pattern.permute.xlu0 0
  %222 = vperm.xlu0 %221, %v215
  %v223 = vpop.permute.xlu0 %222
  %v225 = vsel %vm209, %v218, %v223
  %226 = vset.pattern.permute.xlu0 0
  %227 = vperm.xlu0 %226, %v205
  %v228 = vpop.permute.xlu0 %227
  %v230 = vsel %vm208, %v228, %v225
  %vm231 = vcmask 23552
  %232 = vst.msk [vmem:[%s5] sm:$0xff] %vm231, %v230
  // Predicated region
  $region22: #{tpu_custom_call.1} parent=0 // pred_check
    _
  $region23: #{tpu_custom_call.1} parent=0 // pred_check_branch
    %234 = sbr.rel (0) target = $region25
  $region24: #{tpu_custom_call.1} parent=0 // pred_region
    _
  $region25: #{tpu_custom_call.1} parent=0 // pred_fallthru
    _
  // Predicated region
  $region26: #{tpu_custom_call.1} parent=0 // pred_check
    _
  $region27: #{tpu_custom_call.1} parent=0 // pred_check_branch
    %236 = sbr.rel (0) target = $region29
  $region28: #{tpu_custom_call.1} parent=0 // pred_region
    _
  $region29: #{tpu_custom_call.1} parent=0 // pred_fallthru
    _

</llo_original>
